<compile_context>
chip_gen: v7x
topology: tpu7x:2x2x1
jax: 0.10.0
libtpu: 0.0.40
codegen_flags: <defaults>
</compile_context>

<pallas_src>
import functools

import jax
import jax.numpy as jnp
from jax.experimental import pallas as pl
from jax.experimental.pallas import tpu as pltpu


F_IN = 868          # fc1 input features (from the PyTorch module)
F_PAD = 896         # 868 rounded up to a multiple of 128
H1, H2 = 256, 128   # hidden sizes
OUT_PAD = 128       # n_actions padded to a full lane (lane-dense stores)


def _round_up(n, m):
    return ((n + m - 1) // m) * m


# ---------------------------------------------------------------------------
# Pallas kernel: fused 3-layer MLP + masked softmax (one batch tile per step)
# ---------------------------------------------------------------------------
def actor_mlp_kernel(n_actions, x_ref, w1_ref, b1_ref, w2_ref, b2_ref,
                     w3_ref, b3_ref, o_ref):
    # fc1 + relu (bf16 operands, f32 accumulation on the MXU)
    h1 = jnp.dot(x_ref[...], w1_ref[...], preferred_element_type=jnp.float32)
    h1 = jnp.maximum(h1 + b1_ref[...], 0.0)
    # fc2 + relu
    h2 = jnp.dot(h1.astype(jnp.bfloat16), w2_ref[...],
                 preferred_element_type=jnp.float32)
    h2 = jnp.maximum(h2 + b2_ref[...], 0.0)
    # fc3 logits
    logits = jnp.dot(h2.astype(jnp.bfloat16), w3_ref[...],
                     preferred_element_type=jnp.float32)
    logits = logits + b3_ref[...]
    # Mask padded action lanes so they contribute nothing to the softmax.
    col = jax.lax.broadcasted_iota(jnp.int32, logits.shape, 1)
    logits = jnp.where(col < n_actions, logits, -1e30)
    # Numerically stable softmax along the lane axis.
    m = jnp.max(logits, axis=-1, keepdims=True)
    e = jnp.exp(logits - m)
    s = jnp.sum(e, axis=-1, keepdims=True)
    o_ref[...] = e / s


# ---------------------------------------------------------------------------
# One-time parameter preparation: pad + cast to bf16 (done once, not per call)
# ---------------------------------------------------------------------------
def prepare_params(params):
    w1, b1, w2, b2, w3, b3 = params
    n_act = w3.shape[1]
    bf = jnp.bfloat16
    w1_p = jnp.zeros((F_PAD, H1), bf).at[:F_IN, :].set(w1.astype(bf))
    b1_p = b1.reshape(1, H1).astype(jnp.float32)
    w2_p = w2.astype(bf)                                   # (256, 128) aligned
    b2_p = b2.reshape(1, H2).astype(jnp.float32)
    w3_p = jnp.zeros((H2, OUT_PAD), bf).at[:, :n_act].set(w3.astype(bf))
    b3_p = jnp.zeros((1, OUT_PAD), jnp.float32).at[:, :n_act].set(
        b3.reshape(1, -1).astype(jnp.float32))
    return (w1_p, b1_p, w2_p, b2_p, w3_p, b3_p)


# ---------------------------------------------------------------------------
# Forward wrapper
# ---------------------------------------------------------------------------
@functools.partial(jax.jit, static_argnames=("n_actions",))
def actor_forward(state, padded_params, n_actions):
    """Equivalent of ActorNetwork.forward(state) -> softmax action probs."""
    w1_p, b1_p, w2_p, b2_p, w3_p, b3_p = padded_params

    if state.ndim == 1:                       # state.unsqueeze(0)
        state = state[None, :]
    x = state.reshape(state.shape[0], -1)     # state.view(B, -1)
    B, f = x.shape
    if f != F_IN:
        raise ValueError(f"fc1 expects {F_IN} input features, got {f}")

    # bf16 activations: pad batch to a multiple of 16 (bf16 sublane packing),
    # features to 896.  Batch tile TB keeps VMEM use small on all generations
    # (<< 64 MiB on v7x) while letting the parallel grid split large batches.
    B16 = _round_up(B, 16)
    TB = min(256, B16)
    B_pad = _round_up(B16, TB)
    x_p = jnp.pad(x.astype(jnp.bfloat16),
                  ((0, B_pad - B), (0, F_PAD - F_IN)))     # single pad/copy

    grid = (B_pad // TB,)
    out_p = pl.pallas_call(
        functools.partial(actor_mlp_kernel, n_actions),
        out_shape=jax.ShapeDtypeStruct((B_pad, OUT_PAD), jnp.float32),
        grid=grid,
        in_specs=[
            pl.BlockSpec((TB, F_PAD), lambda i: (i, 0)),   # x (tiled over batch)
            pl.BlockSpec((F_PAD, H1), lambda i: (0, 0)),   # w1 (resident)
            pl.BlockSpec((1, H1),     lambda i: (0, 0)),   # b1
            pl.BlockSpec((H1, H2),    lambda i: (0, 0)),   # w2
            pl.BlockSpec((1, H2),     lambda i: (0, 0)),   # b2
            pl.BlockSpec((H2, OUT_PAD), lambda i: (0, 0)), # w3
            pl.BlockSpec((1, OUT_PAD),  lambda i: (0, 0)), # b3
        ],
        out_specs=pl.BlockSpec((TB, OUT_PAD), lambda i: (i, 0)),
        compiler_params=pltpu.CompilerParams(
            dimension_semantics=("parallel",)),
    )(x_p, w1_p, b1_p, w2_p, b2_p, w3_p, b3_p)

    # Un-pad: keep real batch rows and the real action columns.
    return out_p[:B, :n_actions]


# ---------------------------------------------------------------------------
# Deterministic parameter init (PyTorch nn.Linear default: U(-1/sqrt(fan_in), +))
# Weights stored as (in_features, out_features) so forward is x @ W.
# ---------------------------------------------------------------------------
def init_params(key, n_actions):
    dims = [(F_IN, H1), (H1, H2), (H2, n_actions)]
    params = []
    for fan_in, fan_out in dims:
        key, kw, kb = jax.random.split(key, 3)
        bound = 1.0 / jnp.sqrt(fan_in)
        w = jax.random.uniform(kw, (fan_in, fan_out), jnp.float32, -bound, bound)
        b = jax.random.uniform(kb, (fan_out,), jnp.float32, -bound, bound)
        params += [w, b]
    return tuple(params)


def reference_forward_bf16(state, params):
    """Pure-JAX reference with the same bf16-operand / f32-accumulate scheme."""
    w1, b1, w2, b2, w3, b3 = params
    if state.ndim == 1:
        state = state[None, :]
    x = state.reshape(state.shape[0], -1)
    bf = jnp.bfloat16
    h1 = jnp.maximum(jnp.dot(x.astype(bf), w1.astype(bf),
                             preferred_element_type=jnp.float32) + b1, 0.0)
    h2 = jnp.maximum(jnp.dot(h1.astype(bf), w2.astype(bf),
                             preferred_element_type=jnp.float32) + b2, 0.0)
    logits = jnp.dot(h2.astype(bf), w3.astype(bf),
                     preferred_element_type=jnp.float32) + b3
    return jax.nn.softmax(logits, axis=-1)


def reference_forward_f32(state, params):
    w1, b1, w2, b2, w3, b3 = params
    if state.ndim == 1:
        state = state[None, :]
    x = state.reshape(state.shape[0], -1)
    h1 = jnp.maximum(x @ w1 + b1, 0.0)
    h2 = jnp.maximum(h1 @ w2 + b2, 0.0)
    return jax.nn.softmax(h2 @ w3 + b3, axis=-1)


if __name__ == "__main__":
    key = jax.random.PRNGKey(0)
    k_params, k_state = jax.random.split(key)

    n_actions = 5
    params = init_params(k_params, n_actions)
    padded_params = prepare_params(params)   # one-time pad/cast (review item 1,2)

    batch = 4
    state = jax.random.normal(k_state, (batch, F_IN), jnp.float32)

    probs = actor_forward(state, padded_params, n_actions=n_actions)
    probs = jax.block_until_ready(probs)

    assert probs.shape == (batch, n_actions), probs.shape
    # Rows are valid probability distributions.
    assert jnp.allclose(jnp.sum(probs, axis=-1), 1.0, atol=1e-3)
    # Matches a reference using the same bf16/f32-accumulate arithmetic.
    ref_bf16 = reference_forward_bf16(state, params)
    assert jnp.allclose(probs, ref_bf16, atol=1e-4, rtol=1e-3), "mismatch vs bf16 reference"
    # Close to the full-f32 PyTorch-style reference (bf16 weights => loose tol).
    ref_f32 = reference_forward_f32(state, params)
    assert jnp.allclose(probs, ref_f32, atol=2e-2, rtol=2e-2), "mismatch vs f32 reference"

    print("KERNEL_OK")
</pallas_src>

<mosaic_0001>
module attributes {stable_mosaic.version = 11 : i64} {
  func.func @actor_mlp_kernel(%arg0: i32, %arg1: memref<16x896xbf16, #tpu.memory_space<vmem>>, %arg2: memref<896x256xbf16, #tpu.memory_space<vmem>>, %arg3: memref<1x256xf32, #tpu.memory_space<vmem>>, %arg4: memref<256x128xbf16, #tpu.memory_space<vmem>>, %arg5: memref<1x128xf32, #tpu.memory_space<vmem>>, %arg6: memref<128x128xbf16, #tpu.memory_space<vmem>>, %arg7: memref<1x128xf32, #tpu.memory_space<vmem>>, %arg8: memref<16x128xf32, #tpu.memory_space<vmem>>) attributes {dimension_semantics = [#tpu.dimension_semantics<parallel>], iteration_bounds = array<i64: 1>, scalar_prefetch = 0 : i64, scratch_operands = 0 : i64, tpu.core_type = #tpu.core_type<tc>, window_params = [{transform_indices = @transform_0, window_bounds = array<i64: 16, 896>}, {pipeline_mode = #tpu.pipeline_mode<synchronous>, transform_indices = @transform_1, window_bounds = array<i64: 896, 256>}, {pipeline_mode = #tpu.pipeline_mode<synchronous>, transform_indices = @transform_2, window_bounds = array<i64: 1, 256>}, {pipeline_mode = #tpu.pipeline_mode<synchronous>, transform_indices = @transform_3, window_bounds = array<i64: 256, 128>}, {pipeline_mode = #tpu.pipeline_mode<synchronous>, transform_indices = @transform_4, window_bounds = array<i64: 1, 128>}, {pipeline_mode = #tpu.pipeline_mode<synchronous>, transform_indices = @transform_5, window_bounds = array<i64: 128, 128>}, {pipeline_mode = #tpu.pipeline_mode<synchronous>, transform_indices = @transform_6, window_bounds = array<i64: 1, 128>}, {transform_indices = @transform_7, window_bounds = array<i64: 16, 128>}]} {
    %c0 = arith.constant 0 : index
    %c0_0 = arith.constant 0 : index
    %0 = vector.load %arg1[%c0, %c0_0] : memref<16x896xbf16, #tpu.memory_space<vmem>>, vector<16x896xbf16>
    %c0_1 = arith.constant 0 : index
    %c0_2 = arith.constant 0 : index
    %1 = vector.load %arg2[%c0_1, %c0_2] : memref<896x256xbf16, #tpu.memory_space<vmem>>, vector<896x256xbf16>
    %cst = arith.constant dense<0.000000e+00> : vector<16x256xf32>
    %2 = tpu.matmul %0, %1, %cst {dimension_numbers = #tpu.dot_dimension_numbers<[1], [0], [0], [1], [0, 0, 1, 1], [], []>} : vector<16x896xbf16>, vector<896x256xbf16>, vector<16x256xf32> -> vector<16x256xf32>
    %c0_3 = arith.constant 0 : index
    %c0_4 = arith.constant 0 : index
    %3 = vector.load %arg3[%c0_3, %c0_4] : memref<1x256xf32, #tpu.memory_space<vmem>>, vector<1x256xf32>
    %4 = vector.broadcast %3 : vector<1x256xf32> to vector<16x256xf32>
    %5 = arith.addf %2, %4 : vector<16x256xf32>
    %cst_5 = arith.constant 0.000000e+00 : f32
    %6 = vector.broadcast %cst_5 : f32 to vector<16x256xf32>
    %7 = arith.maximumf %5, %6 : vector<16x256xf32>
    %8 = arith.truncf %7 : vector<16x256xf32> to vector<16x256xbf16>
    %c0_6 = arith.constant 0 : index
    %c0_7 = arith.constant 0 : index
    %9 = vector.load %arg4[%c0_6, %c0_7] : memref<256x128xbf16, #tpu.memory_space<vmem>>, vector<256x128xbf16>
    %cst_8 = arith.constant dense<0.000000e+00> : vector<16x128xf32>
    %10 = tpu.matmul %8, %9, %cst_8 {dimension_numbers = #tpu.dot_dimension_numbers<[1], [0], [0], [1], [0, 0, 1, 1], [], []>} : vector<16x256xbf16>, vector<256x128xbf16>, vector<16x128xf32> -> vector<16x128xf32>
    %c0_9 = arith.constant 0 : index
    %c0_10 = arith.constant 0 : index
    %11 = vector.load %arg5[%c0_9, %c0_10] : memref<1x128xf32, #tpu.memory_space<vmem>>, vector<1x128xf32>
    %12 = vector.broadcast %11 : vector<1x128xf32> to vector<16x128xf32>
    %13 = arith.addf %10, %12 : vector<16x128xf32>
    %cst_11 = arith.constant 0.000000e+00 : f32
    %14 = vector.broadcast %cst_11 : f32 to vector<16x128xf32>
    %15 = arith.maximumf %13, %14 : vector<16x128xf32>
    %16 = arith.truncf %15 : vector<16x128xf32> to vector<16x128xbf16>
    %c0_12 = arith.constant 0 : index
    %c0_13 = arith.constant 0 : index
    %17 = vector.load %arg6[%c0_12, %c0_13] : memref<128x128xbf16, #tpu.memory_space<vmem>>, vector<128x128xbf16>
    %cst_14 = arith.constant dense<0.000000e+00> : vector<16x128xf32>
    %18 = tpu.matmul %16, %17, %cst_14 {dimension_numbers = #tpu.dot_dimension_numbers<[1], [0], [0], [1], [0, 0, 1, 1], [], []>} : vector<16x128xbf16>, vector<128x128xbf16>, vector<16x128xf32> -> vector<16x128xf32>
    %c0_15 = arith.constant 0 : index
    %c0_16 = arith.constant 0 : index
    %19 = vector.load %arg7[%c0_15, %c0_16] : memref<1x128xf32, #tpu.memory_space<vmem>>, vector<1x128xf32>
    %20 = vector.broadcast %19 : vector<1x128xf32> to vector<16x128xf32>
    %21 = arith.addf %18, %20 : vector<16x128xf32>
    %22 = tpu.iota {dimensions = array<i32: 1>} : vector<16x128xi32>
    %c5_i32 = arith.constant 5 : i32
    %23 = vector.broadcast %c5_i32 : i32 to vector<16x128xi32>
    %24 = arith.cmpi slt, %22, %23 : vector<16x128xi32>
    %cst_17 = arith.constant -1.000000e+30 : f32
    %25 = vector.broadcast %cst_17 : f32 to vector<16x128xf32>
    %26 = arith.select %24, %21, %25 : vector<16x128xi1>, vector<16x128xf32>
    %cst_18 = arith.constant dense<0xFF800000> : vector<16xf32>
    %27 = vector.multi_reduction <maximumf>, %26, %cst_18 [1] : vector<16x128xf32> to vector<16xf32>
    %28 = vector.shape_cast %27 : vector<16xf32> to vector<16x1xf32>
    %29 = vector.broadcast %28 : vector<16x1xf32> to vector<16x128xf32>
    %30 = arith.subf %26, %29 : vector<16x128xf32>
    %31 = math.exp %30 : vector<16x128xf32>
    %cst_19 = arith.constant dense<0.000000e+00> : vector<16xf32>
    %32 = vector.multi_reduction <add>, %31, %cst_19 [1] : vector<16x128xf32> to vector<16xf32>
    %33 = vector.shape_cast %32 : vector<16xf32> to vector<16x1xf32>
    %34 = vector.broadcast %33 : vector<16x1xf32> to vector<16x128xf32>
    %35 = arith.divf %31, %34 : vector<16x128xf32>
    %c0_20 = arith.constant 0 : index
    %c0_21 = arith.constant 0 : index
    %36 = vector.load %arg8[%c0_20, %c0_21] : memref<16x128xf32, #tpu.memory_space<vmem>>, vector<16x128xf32>
    tpu.vector_store %arg8[%c0_20, %c0_21], %35 {strides = array<i32>} : memref<16x128xf32, #tpu.memory_space<vmem>>, vector<16x128xf32>,
    return
  }
  func.func @transform_0(%arg0: i32) -> (i32, i32) {
    %c0_i32 = arith.constant 0 : i32
    %c0_i32_0 = arith.constant 0 : i32
    return %arg0, %c0_i32 : i32, i32
  }
  func.func @transform_1(%arg0: i32) -> (i32, i32) {
    %c0_i32 = arith.constant 0 : i32
    %c0_i32_0 = arith.constant 0 : i32
    %c0_i32_1 = arith.constant 0 : i32
    return %c0_i32, %c0_i32_0 : i32, i32
  }
  func.func @transform_2(%arg0: i32) -> (i32, i32) {
    %c0_i32 = arith.constant 0 : i32
    %c0_i32_0 = arith.constant 0 : i32
    %c0_i32_1 = arith.constant 0 : i32
    return %c0_i32, %c0_i32_0 : i32, i32
  }
  func.func @transform_3(%arg0: i32) -> (i32, i32) {
    %c0_i32 = arith.constant 0 : i32
    %c0_i32_0 = arith.constant 0 : i32
    %c0_i32_1 = arith.constant 0 : i32
    return %c0_i32, %c0_i32_0 : i32, i32
  }
  func.func @transform_4(%arg0: i32) -> (i32, i32) {
    %c0_i32 = arith.constant 0 : i32
    %c0_i32_0 = arith.constant 0 : i32
    %c0_i32_1 = arith.constant 0 : i32
    return %c0_i32, %c0_i32_0 : i32, i32
  }
  func.func @transform_5(%arg0: i32) -> (i32, i32) {
    %c0_i32 = arith.constant 0 : i32
    %c0_i32_0 = arith.constant 0 : i32
    %c0_i32_1 = arith.constant 0 : i32
    return %c0_i32, %c0_i32_0 : i32, i32
  }
  func.func @transform_6(%arg0: i32) -> (i32, i32) {
    %c0_i32 = arith.constant 0 : i32
    %c0_i32_0 = arith.constant 0 : i32
    %c0_i32_1 = arith.constant 0 : i32
    return %c0_i32, %c0_i32_0 : i32, i32
  }
  func.func @transform_7(%arg0: i32) -> (i32, i32) {
    %c0_i32 = arith.constant 0 : i32
    %c0_i32_0 = arith.constant 0 : i32
    return %arg0, %c0_i32 : i32, i32
  }
}

</mosaic_0001>

<llo_original>
// kernel: actor_forward.1
$region0: #{actor_forward.1}
  #allocation0 [shape = 'u32[]', space=smem, size = 0x4, offset = 0x4, fixed_abs, tag = 'smem constant byte address 0x4 - core index']
  #allocation1 [shape = 'u32[144,128]{1,0:T(1,128)}', space=vmem, size = 0x12000, scoped, tag = 'internal scratch']
  %s0 = inlined_call_operand.vmem [shape: bf16[16,896], index: 0, kind: input, shape index: {}]
  %s1 = inlined_call_operand.hbm [shape: bf16[896,256], index: 1, kind: input, shape index: {}]
  %s2 = inlined_call_operand.vmem [shape: f32[1,256], index: 2, kind: input, shape index: {}]
  %s3 = inlined_call_operand.hbm [shape: bf16[256,128], index: 3, kind: input, shape index: {}]
  %s4 = inlined_call_operand.vmem [shape: f32[1,128], index: 4, kind: input, shape index: {}]
  %s5 = inlined_call_operand.vmem [shape: bf16[128,128], index: 5, kind: input, shape index: {}]
  %s6 = inlined_call_operand.vmem [shape: f32[1,128], index: 6, kind: input, shape index: {}]
  %s7 = inlined_call_operand.vmem [shape: f32[16,128], index: 7, kind: output, shape index: {}]
  %s8 = sld [smem:[#allocation0]]
  $region46: #{actor_forward.1} parent=0
    _
  %s10 = ssub.s32 1, %s8
  %s11 = scalar_select 0, %s10, %s8
  $region1: #{actor_forward.1} parent=0
    #allocation2 [shape = 'u8[458752]{0}', space=vmem, size = 0x70000, scoped, tag = 'input window, operand 1, single buffered']
    #allocation3 [shape = 's32[1]{0}', space=sflag, size = 0x4, scoped, tag = 'scoped memory for actor_forward.1']
    #allocation4 [shape = 'u8[65536]{0}', space=vmem, size = 0x10000, scoped, tag = 'input window, operand 3, single buffered']
    #allocation5 [shape = 's32[1]{0}', space=sflag, size = 0x4, scoped, tag = 'scoped memory for actor_forward.1']
    %12 = vsyncpa [#allocation3], 0
    %13 = vsyncpa [#allocation5], 0
    // Predicated region
    $region2: #{actor_forward.1} parent=1 // pred_check
      _
    $region3: #{actor_forward.1} parent=1 // pred_check_branch
      %15 = sbr.rel (0) target = $region5
    $region4: #{actor_forward.1} parent=1 // pred_region
      _
    $region5: #{actor_forward.1} parent=1 // pred_fallthru
      _
    // Predicated region
    $region6: #{actor_forward.1} parent=1 // pred_check
      _
    $region7: #{actor_forward.1} parent=1 // pred_check_branch
      %17 = sbr.rel (0) target = $region9
    $region8: #{actor_forward.1} parent=1 // pred_region
      %s19 = ssub.s32 14336, 14336
      %20 = vsyncadd [#allocation3], %s19
      %s21 = sshll.u32 [#allocation2], 4
      %s22 = int_to_ptr.vmem [resolvable:$true] %s21
      %27 = dma.hbm_to_vmem [thread:$0]  %s1, 14336, %s22, [#allocation3], 128, 128, 8
    $region9: #{actor_forward.1} parent=1 // pred_fallthru
      _
    // Predicated region
    $region10: #{actor_forward.1} parent=1 // pred_check
      _
    $region11: #{actor_forward.1} parent=1 // pred_check_branch
      %29 = sbr.rel (0) target = $region13
    $region12: #{actor_forward.1} parent=1 // pred_region
      _
    $region13: #{actor_forward.1} parent=1 // pred_fallthru
      _
    // Predicated region
    $region14: #{actor_forward.1} parent=1 // pred_check
      _
    $region15: #{actor_forward.1} parent=1 // pred_check_branch
      %31 = sbr.rel (0) target = $region17
    $region16: #{actor_forward.1} parent=1 // pred_region
      %s33 = ssub.s32 2048, 2048
      %34 = vsyncadd [#allocation5], %s33
      %s35 = sshll.u32 [#allocation4], 4
      %s36 = int_to_ptr.vmem [resolvable:$true] %s35
      %41 = dma.hbm_to_vmem [thread:$0]  %s3, 2048, %s36, [#allocation5], 64, 64, 4
    $region17: #{actor_forward.1} parent=1 // pred_fallthru
      _
    // Predicated region
    $region18: #{actor_forward.1} parent=1 // pred_check
      _
    $region19: #{actor_forward.1} parent=1 // pred_check_branch
      %43 = sbr.rel (0) target = $region21
    $region20: #{actor_forward.1} parent=1 // pred_region
      _
    $region21: #{actor_forward.1} parent=1 // pred_fallthru
      _
    // Predicated region
    $region22: #{actor_forward.1} parent=1 // pred_check
      _
    $region23: #{actor_forward.1} parent=1 // pred_check_branch
      %45 = sbr.rel (0) target = $region25
    $region24: #{actor_forward.1} parent=1 // pred_region
      _
    $region25: #{actor_forward.1} parent=1 // pred_fallthru
      _
    // Predicated region
    $region26: #{actor_forward.1} parent=1 // pred_check
      _
    $region27: #{actor_forward.1} parent=1 // pred_check_branch
      %47 = sbr.rel (0) target = $region29
    $region28: #{actor_forward.1} parent=1 // pred_region
      _
    $region29: #{actor_forward.1} parent=1 // pred_fallthru
      _
    // Predicated region
    $region30: #{actor_forward.1} parent=1 // pred_check
      _
    $region31: #{actor_forward.1} parent=1 // pred_check_branch
      %49 = sbr.rel (0) target = $region33
    $region32: #{actor_forward.1} parent=1 // pred_region
      %50 = dma.done [#allocation3], 14336
    $region33: #{actor_forward.1} parent=1 // pred_fallthru
      _
    // Predicated region
    $region34: #{actor_forward.1} parent=1 // pred_check
      _
    $region35: #{actor_forward.1} parent=1 // pred_check_branch
      %52 = sbr.rel (0) target = $region37
    $region36: #{actor_forward.1} parent=1 // pred_region
      %53 = dma.done [#allocation5], 2048
    $region37: #{actor_forward.1} parent=1 // pred_fallthru
      _
    %v55 = vld [vmem:[%s0] sm:$0xff]
    %v56 = vld [vmem:[%s0 + $0x8] sm:$0xff]
    %v57 = vld [vmem:[%s0 + $0x10] sm:$0xff]
    %v58 = vld [vmem:[%s0 + $0x18] sm:$0xf]
    %v59 = vld [vmem:[%s0 + $0x1c] sm:$0xff]
    %v60 = vld [vmem:[%s0 + $0x24] sm:$0xff]
    %v61 = vld [vmem:[%s0 + $0x2c] sm:$0xff]
    %v62 = vld [vmem:[%s0 + $0x34] sm:$0xf]
    %v63 = vld [vmem:[#allocation2] sm:$0xff]
    %v64 = vld [vmem:[#allocation2 + $0x8] sm:$0xff]
    %v65 = vld [vmem:[#allocation2 + $0x10] sm:$0xff]
    %v66 = vld [vmem:[#allocation2 + $0x18] sm:$0xff]
    %v67 = vld [vmem:[#allocation2 + $0x20] sm:$0xff]
    %v68 = vld [vmem:[#allocation2 + $0x28] sm:$0xff]
    %v69 = vld [vmem:[#allocation2 + $0x30] sm:$0xff]
    %v70 = vld [vmem:[#allocation2 + $0x38] sm:$0xff]
    %v71 = vld [vmem:[#allocation2 + $0x40] sm:$0xff]
    %v72 = vld [vmem:[#allocation2 + $0x48] sm:$0xff]
    %v73 = vld [vmem:[#allocation2 + $0x50] sm:$0xff]
    %v74 = vld [vmem:[#allocation2 + $0x58] sm:$0xff]
    %v75 = vld [vmem:[#allocation2 + $0x60] sm:$0xff]
    %v76 = vld [vmem:[#allocation2 + $0x68] sm:$0xff]
    %v77 = vld [vmem:[#allocation2 + $0x70] sm:$0xff]
    %v78 = vld [vmem:[#allocation2 + $0x78] sm:$0xff]
    %v79 = vld [vmem:[#allocation2 + $0x80] sm:$0xff]
    %v80 = vld [vmem:[#allocation2 + $0x88] sm:$0xff]
    %v81 = vld [vmem:[#allocation2 + $0x90] sm:$0xff]
    %v82 = vld [vmem:[#allocation2 + $0x98] sm:$0xff]
    %v83 = vld [vmem:[#allocation2 + $0xa0] sm:$0xff]
    %v84 = vld [vmem:[#allocation2 + $0xa8] sm:$0xff]
    %v85 = vld [vmem:[#allocation2 + $0xb0] sm:$0xff]
    %v86 = vld [vmem:[#allocation2 + $0xb8] sm:$0xff]
    %v87 = vld [vmem:[#allocation2 + $0xc0] sm:$0xff]
    %v88 = vld [vmem:[#allocation2 + $0xc8] sm:$0xff]
    %v89 = vld [vmem:[#allocation2 + $0xd0] sm:$0xff]
    %v90 = vld [vmem:[#allocation2 + $0xd8] sm:$0xff]
    %v91 = vld [vmem:[#allocation2 + $0xe0] sm:$0xff]
    %v92 = vld [vmem:[#allocation2 + $0xe8] sm:$0xff]
    %v93 = vld [vmem:[#allocation2 + $0xf0] sm:$0xff]
    %v94 = vld [vmem:[#allocation2 + $0xf8] sm:$0xff]
    %v95 = vld [vmem:[#allocation2 + $0x100] sm:$0xff]
    %v96 = vld [vmem:[#allocation2 + $0x108] sm:$0xff]
    %v97 = vld [vmem:[#allocation2 + $0x110] sm:$0xff]
    %v98 = vld [vmem:[#allocation2 + $0x118] sm:$0xff]
    %v99 = vld [vmem:[#allocation2 + $0x120] sm:$0xff]
    %v100 = vld [vmem:[#allocation2 + $0x128] sm:$0xff]
    %v101 = vld [vmem:[#allocation2 + $0x130] sm:$0xff]
    %v102 = vld [vmem:[#allocation2 + $0x138] sm:$0xff]
    %v103 = vld [vmem:[#allocation2 + $0x140] sm:$0xff]
    %v104 = vld [vmem:[#allocation2 + $0x148] sm:$0xff]
    %v105 = vld [vmem:[#allocation2 + $0x150] sm:$0xff]
    %v106 = vld [vmem:[#allocation2 + $0x158] sm:$0xff]
    %v107 = vld [vmem:[#allocation2 + $0x160] sm:$0xff]
    %v108 = vld [vmem:[#allocation2 + $0x168] sm:$0xff]
    %v109 = vld [vmem:[#allocation2 + $0x170] sm:$0xff]
    %v110 = vld [vmem:[#allocation2 + $0x178] sm:$0xff]
    %v111 = vld [vmem:[#allocation2 + $0x180] sm:$0xff]
    %v112 = vld [vmem:[#allocation2 + $0x188] sm:$0xff]
    %v113 = vld [vmem:[#allocation2 + $0x190] sm:$0xff]
    %v114 = vld [vmem:[#allocation2 + $0x198] sm:$0xff]
    %v115 = vld [vmem:[#allocation2 + $0x1a0] sm:$0xff]
    %v116 = vld [vmem:[#allocation2 + $0x1a8] sm:$0xff]
    %v117 = vld [vmem:[#allocation2 + $0x1b0] sm:$0xff]
    %v118 = vld [vmem:[#allocation2 + $0x1b8] sm:$0xff]
    %v119 = vld [vmem:[#allocation2 + $0x1c0] sm:$0xff]
    %v120 = vld [vmem:[#allocation2 + $0x1c8] sm:$0xff]
    %v121 = vld [vmem:[#allocation2 + $0x1d0] sm:$0xff]
    %v122 = vld [vmem:[#allocation2 + $0x1d8] sm:$0xff]
    %v123 = vld [vmem:[#allocation2 + $0x1e0] sm:$0xff]
    %v124 = vld [vmem:[#allocation2 + $0x1e8] sm:$0xff]
    %v125 = vld [vmem:[#allocation2 + $0x1f0] sm:$0xff]
    %v126 = vld [vmem:[#allocation2 + $0x1f8] sm:$0xff]
    %v127 = vld [vmem:[#allocation2 + $0x200] sm:$0xff]
    %v128 = vld [vmem:[#allocation2 + $0x208] sm:$0xff]
    %v129 = vld [vmem:[#allocation2 + $0x210] sm:$0xff]
    %v130 = vld [vmem:[#allocation2 + $0x218] sm:$0xff]
    %v131 = vld [vmem:[#allocation2 + $0x220] sm:$0xff]
    %v132 = vld [vmem:[#allocation2 + $0x228] sm:$0xff]
    %v133 = vld [vmem:[#allocation2 + $0x230] sm:$0xff]
    %v134 = vld [vmem:[#allocation2 + $0x238] sm:$0xff]
    %v135 = vld [vmem:[#allocation2 + $0x240] sm:$0xff]
    %v136 = vld [vmem:[#allocation2 + $0x248] sm:$0xff]
    %v137 = vld [vmem:[#allocation2 + $0x250] sm:$0xff]
    %v138 = vld [vmem:[#allocation2 + $0x258] sm:$0xff]
    %v139 = vld [vmem:[#allocation2 + $0x260] sm:$0xff]
    %v140 = vld [vmem:[#allocation2 + $0x268] sm:$0xff]
    %v141 = vld [vmem:[#allocation2 + $0x270] sm:$0xff]
    %v142 = vld [vmem:[#allocation2 + $0x278] sm:$0xff]
    %v143 = vld [vmem:[#allocation2 + $0x280] sm:$0xff]
    %v144 = vld [vmem:[#allocation2 + $0x288] sm:$0xff]
    %v145 = vld [vmem:[#allocation2 + $0x290] sm:$0xff]
    %v146 = vld [vmem:[#allocation2 + $0x298] sm:$0xff]
    %v147 = vld [vmem:[#allocation2 + $0x2a0] sm:$0xff]
    %v148 = vld [vmem:[#allocation2 + $0x2a8] sm:$0xff]
    %v149 = vld [vmem:[#allocation2 + $0x2b0] sm:$0xff]
    %v150 = vld [vmem:[#allocation2 + $0x2b8] sm:$0xff]
    %v151 = vld [vmem:[#allocation2 + $0x2c0] sm:$0xff]
    %v152 = vld [vmem:[#allocation2 + $0x2c8] sm:$0xff]
    %v153 = vld [vmem:[#allocation2 + $0x2d0] sm:$0xff]
    %v154 = vld [vmem:[#allocation2 + $0x2d8] sm:$0xff]
    %v155 = vld [vmem:[#allocation2 + $0x2e0] sm:$0xff]
    %v156 = vld [vmem:[#allocation2 + $0x2e8] sm:$0xff]
    %v157 = vld [vmem:[#allocation2 + $0x2f0] sm:$0xff]
    %v158 = vld [vmem:[#allocation2 + $0x2f8] sm:$0xff]
    %v159 = vld [vmem:[#allocation2 + $0x300] sm:$0xff]
    %v160 = vld [vmem:[#allocation2 + $0x308] sm:$0xff]
    %v161 = vld [vmem:[#allocation2 + $0x310] sm:$0xff]
    %v162 = vld [vmem:[#allocation2 + $0x318] sm:$0xff]
    %v163 = vld [vmem:[#allocation2 + $0x320] sm:$0xff]
    %v164 = vld [vmem:[#allocation2 + $0x328] sm:$0xff]
    %v165 = vld [vmem:[#allocation2 + $0x330] sm:$0xff]
    %v166 = vld [vmem:[#allocation2 + $0x338] sm:$0xff]
    %v167 = vld [vmem:[#allocation2 + $0x340] sm:$0xff]
    %v168 = vld [vmem:[#allocation2 + $0x348] sm:$0xff]
    %v169 = vld [vmem:[#allocation2 + $0x350] sm:$0xff]
    %v170 = vld [vmem:[#allocation2 + $0x358] sm:$0xff]
    %v171 = vld [vmem:[#allocation2 + $0x360] sm:$0xff]
    %v172 = vld [vmem:[#allocation2 + $0x368] sm:$0xff]
    %v173 = vld [vmem:[#allocation2 + $0x370] sm:$0xff]
    %v174 = vld [vmem:[#allocation2 + $0x378] sm:$0xff]
    %v175 = vld [vmem:[%s2] sm:$0x3]
    %v177 = vlaneseq
    %v178 = vshrl.u32 %v177, 7
    %v179 = vsub.s32 0, %v178
    %v180 = vrot.slane %v175, %v179
    %v181 = vlaneseq
    %v182 = vshrl.u32 %v181, 7
    %v183 = vsub.s32 1, %v182
    %v184 = vrot.slane %v175, %v183
    %v195 = vunpack.c.l.b16 %v55
    %v196 = vunpack.c.h.b16 %v55
    %v197 = vunpack.c.l.b16 %v56
    %v198 = vunpack.c.h.b16 %v56
    %v199 = vunpack.c.l.b16 %v57
    %v200 = vunpack.c.h.b16 %v57
    %v201 = vunpack.c.l.b16 %v58
    %v202 = vunpack.c.l.b16 %v59
    %v203 = vunpack.c.h.b16 %v59
    %v204 = vunpack.c.l.b16 %v60
    %v205 = vunpack.c.h.b16 %v60
    %v206 = vunpack.c.l.b16 %v61
    %v207 = vunpack.c.h.b16 %v61
    %v208 = vunpack.c.l.b16 %v62
    %v209 = vpack.c.b16 %v202, %v195
    %v210 = vpack.c.b16 %v203, %v196
    %v211 = vpack.c.b16 %v204, %v197
    %v212 = vpack.c.b16 %v205, %v198
    %v213 = vpack.c.b16 %v206, %v199
    %v214 = vpack.c.b16 %v207, %v200
    %v215 = vpack.c.b16 %v208, %v201
    %v335 = vunpack.c.l.b16 %v63
    %v336 = vunpack.c.h.b16 %v63
    %v337 = vunpack.c.l.b16 %v64
    %v338 = vunpack.c.h.b16 %v64
    %v339 = vunpack.c.l.b16 %v65
    %v340 = vunpack.c.h.b16 %v65
    %v341 = vunpack.c.l.b16 %v66
    %v342 = vunpack.c.h.b16 %v66
    %v343 = vunpack.c.l.b16 %v67
    %v344 = vunpack.c.h.b16 %v67
    %v345 = vunpack.c.l.b16 %v68
    %v346 = vunpack.c.h.b16 %v68
    %v347 = vunpack.c.l.b16 %v69
    %v348 = vunpack.c.h.b16 %v69
    %v349 = vunpack.c.l.b16 %v70
    %v350 = vunpack.c.h.b16 %v70
    %v351 = vunpack.c.l.b16 %v71
    %v352 = vunpack.c.h.b16 %v71
    %v353 = vunpack.c.l.b16 %v72
    %v354 = vunpack.c.h.b16 %v72
    %v355 = vunpack.c.l.b16 %v73
    %v356 = vunpack.c.h.b16 %v73
    %v357 = vunpack.c.l.b16 %v74
    %v358 = vunpack.c.h.b16 %v74
    %v359 = vunpack.c.l.b16 %v75
    %v360 = vunpack.c.h.b16 %v75
    %v361 = vunpack.c.l.b16 %v76
    %v362 = vunpack.c.h.b16 %v76
    %v363 = vunpack.c.l.b16 %v77
    %v364 = vunpack.c.h.b16 %v77
    %v365 = vunpack.c.l.b16 %v78
    %v366 = vunpack.c.h.b16 %v78
    %v367 = vunpack.c.l.b16 %v79
    %v368 = vunpack.c.h.b16 %v79
    %v369 = vunpack.c.l.b16 %v80
    %v370 = vunpack.c.h.b16 %v80
    %v371 = vunpack.c.l.b16 %v81
    %v372 = vunpack.c.h.b16 %v81
    %v373 = vunpack.c.l.b16 %v82
    %v374 = vunpack.c.h.b16 %v82
    %v375 = vunpack.c.l.b16 %v83
    %v376 = vunpack.c.h.b16 %v83
    %v377 = vunpack.c.l.b16 %v84
    %v378 = vunpack.c.h.b16 %v84
    %v379 = vunpack.c.l.b16 %v85
    %v380 = vunpack.c.h.b16 %v85
    %v381 = vunpack.c.l.b16 %v86
    %v382 = vunpack.c.h.b16 %v86
    %v383 = vunpack.c.l.b16 %v87
    %v384 = vunpack.c.h.b16 %v87
    %v385 = vunpack.c.l.b16 %v88
    %v386 = vunpack.c.h.b16 %v88
    %v387 = vunpack.c.l.b16 %v89
    %v388 = vunpack.c.h.b16 %v89
    %v389 = vunpack.c.l.b16 %v90
    %v390 = vunpack.c.h.b16 %v90
    %v391 = vunpack.c.l.b16 %v91
    %v392 = vunpack.c.h.b16 %v91
    %v393 = vunpack.c.l.b16 %v92
    %v394 = vunpack.c.h.b16 %v92
    %v395 = vunpack.c.l.b16 %v93
    %v396 = vunpack.c.h.b16 %v93
    %v397 = vunpack.c.l.b16 %v94
    %v398 = vunpack.c.h.b16 %v94
    %v399 = vunpack.c.l.b16 %v95
    %v400 = vunpack.c.h.b16 %v95
    %v401 = vunpack.c.l.b16 %v96
    %v402 = vunpack.c.h.b16 %v96
    %v403 = vunpack.c.l.b16 %v97
    %v404 = vunpack.c.h.b16 %v97
    %v405 = vunpack.c.l.b16 %v98
    %v406 = vunpack.c.h.b16 %v98
    %v407 = vunpack.c.l.b16 %v99
    %v408 = vunpack.c.h.b16 %v99
    %v409 = vunpack.c.l.b16 %v100
    %v410 = vunpack.c.h.b16 %v100
    %v411 = vunpack.c.l.b16 %v101
    %v412 = vunpack.c.h.b16 %v101
    %v413 = vunpack.c.l.b16 %v102
    %v414 = vunpack.c.h.b16 %v102
    %v415 = vunpack.c.l.b16 %v103
    %v416 = vunpack.c.h.b16 %v103
    %v417 = vunpack.c.l.b16 %v104
    %v418 = vunpack.c.h.b16 %v104
    %v419 = vunpack.c.l.b16 %v105
    %v420 = vunpack.c.h.b16 %v105
    %v421 = vunpack.c.l.b16 %v106
    %v422 = vunpack.c.h.b16 %v106
    %v423 = vunpack.c.l.b16 %v107
    %v424 = vunpack.c.h.b16 %v107
    %v425 = vunpack.c.l.b16 %v108
    %v426 = vunpack.c.h.b16 %v108
    %v427 = vunpack.c.l.b16 %v109
    %v428 = vunpack.c.h.b16 %v109
    %v429 = vunpack.c.l.b16 %v110
    %v430 = vunpack.c.h.b16 %v110
    %v431 = vunpack.c.l.b16 %v111
    %v432 = vunpack.c.h.b16 %v111
    %v433 = vunpack.c.l.b16 %v112
    %v434 = vunpack.c.h.b16 %v112
    %v435 = vunpack.c.l.b16 %v113
    %v436 = vunpack.c.h.b16 %v113
    %v437 = vunpack.c.l.b16 %v114
    %v438 = vunpack.c.h.b16 %v114
    %v439 = vunpack.c.l.b16 %v115
    %v440 = vunpack.c.h.b16 %v115
    %v441 = vunpack.c.l.b16 %v116
    %v442 = vunpack.c.h.b16 %v116
    %v443 = vunpack.c.l.b16 %v117
    %v444 = vunpack.c.h.b16 %v117
    %v445 = vunpack.c.l.b16 %v118
    %v446 = vunpack.c.h.b16 %v118
    %v447 = vunpack.c.l.b16 %v119
    %v448 = vunpack.c.h.b16 %v119
    %v449 = vunpack.c.l.b16 %v120
    %v450 = vunpack.c.h.b16 %v120
    %v451 = vunpack.c.l.b16 %v121
    %v452 = vunpack.c.h.b16 %v121
    %v453 = vunpack.c.l.b16 %v122
    %v454 = vunpack.c.h.b16 %v122
    %v455 = vunpack.c.l.b16 %v123
    %v456 = vunpack.c.h.b16 %v123
    %v457 = vunpack.c.l.b16 %v124
    %v458 = vunpack.c.h.b16 %v124
    %v459 = vunpack.c.l.b16 %v125
    %v460 = vunpack.c.h.b16 %v125
    %v461 = vunpack.c.l.b16 %v126
    %v462 = vunpack.c.h.b16 %v126
    %v463 = vunpack.c.l.b16 %v127
    %v464 = vunpack.c.h.b16 %v127
    %v465 = vunpack.c.l.b16 %v128
    %v466 = vunpack.c.h.b16 %v128
    %v467 = vunpack.c.l.b16 %v129
    %v468 = vunpack.c.h.b16 %v129
    %v469 = vunpack.c.l.b16 %v130
    %v470 = vunpack.c.h.b16 %v130
    %v471 = vunpack.c.l.b16 %v131
    %v472 = vunpack.c.h.b16 %v131
    %v473 = vunpack.c.l.b16 %v132
    %v474 = vunpack.c.h.b16 %v132
    %v475 = vunpack.c.l.b16 %v133
    %v476 = vunpack.c.h.b16 %v133
    %v477 = vunpack.c.l.b16 %v134
    %v478 = vunpack.c.h.b16 %v134
    %v479 = vunpack.c.l.b16 %v135
    %v480 = vunpack.c.h.b16 %v135
    %v481 = vunpack.c.l.b16 %v136
    %v482 = vunpack.c.h.b16 %v136
    %v483 = vunpack.c.l.b16 %v137
    %v484 = vunpack.c.h.b16 %v137
    %v485 = vunpack.c.l.b16 %v138
    %v486 = vunpack.c.h.b16 %v138
    %v487 = vunpack.c.l.b16 %v139
    %v488 = vunpack.c.h.b16 %v139
    %v489 = vunpack.c.l.b16 %v140
    %v490 = vunpack.c.h.b16 %v140
    %v491 = vunpack.c.l.b16 %v141
    %v492 = vunpack.c.h.b16 %v141
    %v493 = vunpack.c.l.b16 %v142
    %v494 = vunpack.c.h.b16 %v142
    %v495 = vunpack.c.l.b16 %v143
    %v496 = vunpack.c.h.b16 %v143
    %v497 = vunpack.c.l.b16 %v144
    %v498 = vunpack.c.h.b16 %v144
    %v499 = vunpack.c.l.b16 %v145
    %v500 = vunpack.c.h.b16 %v145
    %v501 = vunpack.c.l.b16 %v146
    %v502 = vunpack.c.h.b16 %v146
    %v503 = vunpack.c.l.b16 %v147
    %v504 = vunpack.c.h.b16 %v147
    %v505 = vunpack.c.l.b16 %v148
    %v506 = vunpack.c.h.b16 %v148
    %v507 = vunpack.c.l.b16 %v149
    %v508 = vunpack.c.h.b16 %v149
    %v509 = vunpack.c.l.b16 %v150
    %v510 = vunpack.c.h.b16 %v150
    %v511 = vunpack.c.l.b16 %v151
    %v512 = vunpack.c.h.b16 %v151
    %v513 = vunpack.c.l.b16 %v152
    %v514 = vunpack.c.h.b16 %v152
    %v515 = vunpack.c.l.b16 %v153
    %v516 = vunpack.c.h.b16 %v153
    %v517 = vunpack.c.l.b16 %v154
    %v518 = vunpack.c.h.b16 %v154
    %v519 = vunpack.c.l.b16 %v155
    %v520 = vunpack.c.h.b16 %v155
    %v521 = vunpack.c.l.b16 %v156
    %v522 = vunpack.c.h.b16 %v156
    %v523 = vunpack.c.l.b16 %v157
    %v524 = vunpack.c.h.b16 %v157
    %v525 = vunpack.c.l.b16 %v158
    %v526 = vunpack.c.h.b16 %v158
    %v527 = vunpack.c.l.b16 %v159
    %v528 = vunpack.c.h.b16 %v159
    %v529 = vunpack.c.l.b16 %v160
    %v530 = vunpack.c.h.b16 %v160
    %v531 = vunpack.c.l.b16 %v161
    %v532 = vunpack.c.h.b16 %v161
    %v533 = vunpack.c.l.b16 %v162
    %v534 = vunpack.c.h.b16 %v162
    %v535 = vunpack.c.l.b16 %v163
    %v536 = vunpack.c.h.b16 %v163
    %v537 = vunpack.c.l.b16 %v164
    %v538 = vunpack.c.h.b16 %v164
    %v539 = vunpack.c.l.b16 %v165
    %v540 = vunpack.c.h.b16 %v165
    %v541 = vunpack.c.l.b16 %v166
    %v542 = vunpack.c.h.b16 %v166
    %v543 = vunpack.c.l.b16 %v167
    %v544 = vunpack.c.h.b16 %v167
    %v545 = vunpack.c.l.b16 %v168
    %v546 = vunpack.c.h.b16 %v168
    %v547 = vunpack.c.l.b16 %v169
    %v548 = vunpack.c.h.b16 %v169
    %v549 = vunpack.c.l.b16 %v170
    %v550 = vunpack.c.h.b16 %v170
    %v551 = vunpack.c.l.b16 %v171
    %v552 = vunpack.c.h.b16 %v171
    %v553 = vunpack.c.l.b16 %v172
    %v554 = vunpack.c.h.b16 %v172
    %v555 = vunpack.c.l.b16 %v173
    %v556 = vunpack.c.h.b16 %v173
    %v557 = vunpack.c.l.b16 %v174
    %v558 = vunpack.c.h.b16 %v174
    %v559 = vpack.c.b16 %v337, %v335
    %v560 = vpack.c.b16 %v338, %v336
    %v561 = vpack.c.b16 %v341, %v339
    %v562 = vpack.c.b16 %v342, %v340
    %v563 = vpack.c.b16 %v345, %v343
    %v564 = vpack.c.b16 %v346, %v344
    %v565 = vpack.c.b16 %v349, %v347
    %v566 = vpack.c.b16 %v350, %v348
    %v567 = vpack.c.b16 %v353, %v351
    %v568 = vpack.c.b16 %v354, %v352
    %v569 = vpack.c.b16 %v357, %v355
    %v570 = vpack.c.b16 %v358, %v356
    %v571 = vpack.c.b16 %v361, %v359
    %v572 = vpack.c.b16 %v362, %v360
    %v573 = vpack.c.b16 %v365, %v363
    %v574 = vpack.c.b16 %v366, %v364
    %v575 = vpack.c.b16 %v369, %v367
    %v576 = vpack.c.b16 %v370, %v368
    %v577 = vpack.c.b16 %v373, %v371
    %v578 = vpack.c.b16 %v374, %v372
    %v579 = vpack.c.b16 %v377, %v375
    %v580 = vpack.c.b16 %v378, %v376
    %v581 = vpack.c.b16 %v381, %v379
    %v582 = vpack.c.b16 %v382, %v380
    %v583 = vpack.c.b16 %v385, %v383
    %v584 = vpack.c.b16 %v386, %v384
    %v585 = vpack.c.b16 %v389, %v387
    %v586 = vpack.c.b16 %v390, %v388
    %v587 = vpack.c.b16 %v393, %v391
    %v588 = vpack.c.b16 %v394, %v392
    %v589 = vpack.c.b16 %v397, %v395
    %v590 = vpack.c.b16 %v398, %v396
    %v591 = vpack.c.b16 %v401, %v399
    %v592 = vpack.c.b16 %v402, %v400
    %v593 = vpack.c.b16 %v405, %v403
    %v594 = vpack.c.b16 %v406, %v404
    %v595 = vpack.c.b16 %v409, %v407
    %v596 = vpack.c.b16 %v410, %v408
    %v597 = vpack.c.b16 %v413, %v411
    %v598 = vpack.c.b16 %v414, %v412
    %v599 = vpack.c.b16 %v417, %v415
    %v600 = vpack.c.b16 %v418, %v416
    %v601 = vpack.c.b16 %v421, %v419
    %v602 = vpack.c.b16 %v422, %v420
    %v603 = vpack.c.b16 %v425, %v423
    %v604 = vpack.c.b16 %v426, %v424
    %v605 = vpack.c.b16 %v429, %v427
    %v606 = vpack.c.b16 %v430, %v428
    %v607 = vpack.c.b16 %v433, %v431
    %v608 = vpack.c.b16 %v434, %v432
    %v609 = vpack.c.b16 %v437, %v435
    %v610 = vpack.c.b16 %v438, %v436
    %v611 = vpack.c.b16 %v441, %v439
    %v612 = vpack.c.b16 %v442, %v440
    %v613 = vpack.c.b16 %v445, %v443
    %v614 = vpack.c.b16 %v446, %v444
    %v615 = vpack.c.b16 %v449, %v447
    %v616 = vpack.c.b16 %v450, %v448
    %v617 = vpack.c.b16 %v453, %v451
    %v618 = vpack.c.b16 %v454, %v452
    %v619 = vpack.c.b16 %v457, %v455
    %v620 = vpack.c.b16 %v458, %v456
    %v621 = vpack.c.b16 %v461, %v459
    %v622 = vpack.c.b16 %v462, %v460
    %v623 = vpack.c.b16 %v465, %v463
    %v624 = vpack.c.b16 %v466, %v464
    %v625 = vpack.c.b16 %v469, %v467
    %v626 = vpack.c.b16 %v470, %v468
    %v627 = vpack.c.b16 %v473, %v471
    %v628 = vpack.c.b16 %v474, %v472
    %v629 = vpack.c.b16 %v477, %v475
    %v630 = vpack.c.b16 %v478, %v476
    %v631 = vpack.c.b16 %v481, %v479
    %v632 = vpack.c.b16 %v482, %v480
    %v633 = vpack.c.b16 %v485, %v483
    %v634 = vpack.c.b16 %v486, %v484
    %v635 = vpack.c.b16 %v489, %v487
    %v636 = vpack.c.b16 %v490, %v488
    %v637 = vpack.c.b16 %v493, %v491
    %v638 = vpack.c.b16 %v494, %v492
    %v639 = vpack.c.b16 %v497, %v495
    %v640 = vpack.c.b16 %v498, %v496
    %v641 = vpack.c.b16 %v501, %v499
    %v642 = vpack.c.b16 %v502, %v500
    %v643 = vpack.c.b16 %v505, %v503
    %v644 = vpack.c.b16 %v506, %v504
    %v645 = vpack.c.b16 %v509, %v507
    %v646 = vpack.c.b16 %v510, %v508
    %v647 = vpack.c.b16 %v513, %v511
    %v648 = vpack.c.b16 %v514, %v512
    %v649 = vpack.c.b16 %v517, %v515
    %v650 = vpack.c.b16 %v518, %v516
    %v651 = vpack.c.b16 %v521, %v519
    %v652 = vpack.c.b16 %v522, %v520
    %v653 = vpack.c.b16 %v525, %v523
    %v654 = vpack.c.b16 %v526, %v524
    %v655 = vpack.c.b16 %v529, %v527
    %v656 = vpack.c.b16 %v530, %v528
    %v657 = vpack.c.b16 %v533, %v531
    %v658 = vpack.c.b16 %v534, %v532
    %v659 = vpack.c.b16 %v537, %v535
    %v660 = vpack.c.b16 %v538, %v536
    %v661 = vpack.c.b16 %v541, %v539
    %v662 = vpack.c.b16 %v542, %v540
    %v663 = vpack.c.b16 %v545, %v543
    %v664 = vpack.c.b16 %v546, %v544
    %v665 = vpack.c.b16 %v549, %v547
    %v666 = vpack.c.b16 %v550, %v548
    %v667 = vpack.c.b16 %v553, %v551
    %v668 = vpack.c.b16 %v554, %v552
    %v669 = vpack.c.b16 %v557, %v555
    %v670 = vpack.c.b16 %v558, %v556
    %783 = vmatprep.subr.bf16.mxu0 %v560
    %784 = vmatpush1.bf16.msra.mxu0 %v559
    %785 = vmatprep.subr.bf16.mxu0 %v562
    %786 = vmatpush1.bf16.msra.mxu0 %v561
    %787 = vmatprep.subr.bf16.mxu0 %v564
    %788 = vmatpush1.bf16.msra.mxu0 %v563
    %789 = vmatprep.subr.bf16.mxu0 %v566
    %790 = vmatpush1.bf16.msra.mxu0 %v565
    %791 = vmatprep.subr.bf16.mxu0 %v568
    %792 = vmatpush1.bf16.msra.mxu0 %v567
    %793 = vmatprep.subr.bf16.mxu0 %v570
    %794 = vmatpush1.bf16.msra.mxu0 %v569
    %795 = vmatprep.subr.bf16.mxu0 %v572
    %796 = vmatpush1.bf16.msra.mxu0 %v571
    %797 = vmatprep.subr.bf16.mxu0 %v574
    %798 = vmatpush1.bf16.msra.mxu0 %v573
    %799 = vmatprep.subr.bf16.mxu0 %v576
    %800 = vmatpush1.bf16.msra.mxu0 %v575
    %801 = vmatprep.subr.bf16.mxu0 %v578
    %802 = vmatpush1.bf16.msra.mxu0 %v577
    %803 = vmatprep.subr.bf16.mxu0 %v580
    %804 = vmatpush1.bf16.msra.mxu0 %v579
    %805 = vmatprep.subr.bf16.mxu0 %v582
    %806 = vmatpush1.bf16.msra.mxu0 %v581
    %807 = vmatprep.subr.bf16.mxu0 %v584
    %808 = vmatpush1.bf16.msra.mxu0 %v583
    %809 = vmatprep.subr.bf16.mxu0 %v586
    %810 = vmatpush1.bf16.msra.mxu0 %v585
    %811 = vmatprep.subr.bf16.mxu0 %v588
    %812 = vmatpush1.bf16.msra.mxu0 %v587
    %813 = vmatprep.subr.bf16.mxu0 %v590
    %814 = vmatpush1.bf16.msra.mxu0 %v589
    %815 = vmatprep.mubr.bf16.mxu0 %v210
    %816 = vmatmul.mubr.bf16.gmra.mrb[0].mxu0 %v209
    %v817 = vpop.f32.mrb[0].mxu0
    %v818 = vadd.f32 %v180, %v817
    %v819 = vpop.f32.mrb[0].mxu0
    %v820 = vadd.f32 %v184, %v819
    %v821 = vpop.f32.mrb[0].mxu0
    %v822 = vadd.f32 %v180, %v821
    %v823 = vpop.f32.mrb[0].mxu0
    %v824 = vadd.f32 %v184, %v823
    %825 = vdwg.mxu0
    %826 = vmatprep.subr.bf16.mxu0 %v592
    %827 = vmatpush1.bf16.msra.mxu0 %v591
    %828 = vmatprep.subr.bf16.mxu0 %v594
    %829 = vmatpush1.bf16.msra.mxu0 %v593
    %830 = vmatprep.subr.bf16.mxu0 %v596
    %831 = vmatpush1.bf16.msra.mxu0 %v595
    %832 = vmatprep.subr.bf16.mxu0 %v598
    %833 = vmatpush1.bf16.msra.mxu0 %v597
    %834 = vmatprep.subr.bf16.mxu0 %v600
    %835 = vmatpush1.bf16.msra.mxu0 %v599
    %836 = vmatprep.subr.bf16.mxu0 %v602
    %837 = vmatpush1.bf16.msra.mxu0 %v601
    %838 = vmatprep.subr.bf16.mxu0 %v604
    %839 = vmatpush1.bf16.msra.mxu0 %v603
    %840 = vmatprep.subr.bf16.mxu0 %v606
    %841 = vmatpush1.bf16.msra.mxu0 %v605
    %842 = vmatprep.subr.bf16.mxu0 %v608
    %843 = vmatpush1.bf16.msra.mxu0 %v607
    %844 = vmatprep.subr.bf16.mxu0 %v610
    %845 = vmatpush1.bf16.msra.mxu0 %v609
    %846 = vmatprep.subr.bf16.mxu0 %v612
    %847 = vmatpush1.bf16.msra.mxu0 %v611
    %848 = vmatprep.subr.bf16.mxu0 %v614
    %849 = vmatpush1.bf16.msra.mxu0 %v613
    %850 = vmatprep.subr.bf16.mxu0 %v616
    %851 = vmatpush1.bf16.msra.mxu0 %v615
    %852 = vmatprep.subr.bf16.mxu0 %v618
    %853 = vmatpush1.bf16.msra.mxu0 %v617
    %854 = vmatprep.subr.bf16.mxu0 %v620
    %855 = vmatpush1.bf16.msra.mxu0 %v619
    %856 = vmatprep.subr.bf16.mxu0 %v622
    %857 = vmatpush1.bf16.msra.mxu0 %v621
    %858 = vmatprep.mubr.bf16.mxu0 %v212
    %859 = vmatmul.mubr.bf16.gmra.mrb[0].mxu0 %v211
    %v860 = vpop.f32.mrb[0].mxu0
    %v861 = vadd.f32 %v818, %v860
    %v862 = vpop.f32.mrb[0].mxu0
    %v863 = vadd.f32 %v820, %v862
    %v864 = vpop.f32.mrb[0].mxu0
    %v865 = vadd.f32 %v822, %v864
    %v866 = vpop.f32.mrb[0].mxu0
    %v867 = vadd.f32 %v824, %v866
    %868 = vdwg.mxu0
    %869 = vmatprep.subr.bf16.mxu0 %v624
    %870 = vmatpush1.bf16.msra.mxu0 %v623
    %871 = vmatprep.subr.bf16.mxu0 %v626
    %872 = vmatpush1.bf16.msra.mxu0 %v625
    %873 = vmatprep.subr.bf16.mxu0 %v628
    %874 = vmatpush1.bf16.msra.mxu0 %v627
    %875 = vmatprep.subr.bf16.mxu0 %v630
    %876 = vmatpush1.bf16.msra.mxu0 %v629
    %877 = vmatprep.subr.bf16.mxu0 %v632
    %878 = vmatpush1.bf16.msra.mxu0 %v631
    %879 = vmatprep.subr.bf16.mxu0 %v634
    %880 = vmatpush1.bf16.msra.mxu0 %v633
    %881 = vmatprep.subr.bf16.mxu0 %v636
    %882 = vmatpush1.bf16.msra.mxu0 %v635
    %883 = vmatprep.subr.bf16.mxu0 %v638
    %884 = vmatpush1.bf16.msra.mxu0 %v637
    %885 = vmatprep.subr.bf16.mxu0 %v640
    %886 = vmatpush1.bf16.msra.mxu0 %v639
    %887 = vmatprep.subr.bf16.mxu0 %v642
    %888 = vmatpush1.bf16.msra.mxu0 %v641
    %889 = vmatprep.subr.bf16.mxu0 %v644
    %890 = vmatpush1.bf16.msra.mxu0 %v643
    %891 = vmatprep.subr.bf16.mxu0 %v646
    %892 = vmatpush1.bf16.msra.mxu0 %v645
    %893 = vmatprep.subr.bf16.mxu0 %v648
    %894 = vmatpush1.bf16.msra.mxu0 %v647
    %895 = vmatprep.subr.bf16.mxu0 %v650
    %896 = vmatpush1.bf16.msra.mxu0 %v649
    %897 = vmatprep.subr.bf16.mxu0 %v652
    %898 = vmatpush1.bf16.msra.mxu0 %v651
    %899 = vmatprep.subr.bf16.mxu0 %v654
    %900 = vmatpush1.bf16.msra.mxu0 %v653
    %901 = vmatprep.mubr.bf16.mxu0 %v214
    %902 = vmatmul.mubr.bf16.gmra.mrb[0].mxu0 %v213
    %v903 = vpop.f32.mrb[0].mxu0
    %v904 = vadd.f32 %v861, %v903
    %v905 = vpop.f32.mrb[0].mxu0
    %v906 = vadd.f32 %v863, %v905
    %v907 = vpop.f32.mrb[0].mxu0
    %v908 = vadd.f32 %v865, %v907
    %v909 = vpop.f32.mrb[0].mxu0
    %v910 = vadd.f32 %v867, %v909
    %911 = vdwg.mxu0
    %912 = vmatprep.subr.bf16.mxu0 %v656
    %913 = vmatpush1.bf16.msra.mxu0 %v655
    %914 = vmatprep.subr.bf16.mxu0 %v658
    %915 = vmatpush1.bf16.msra.mxu0 %v657
    %916 = vmatprep.subr.bf16.mxu0 %v660
    %917 = vmatpush1.bf16.msra.mxu0 %v659
    %918 = vmatprep.subr.bf16.mxu0 %v662
    %919 = vmatpush1.bf16.msra.mxu0 %v661
    %920 = vmatprep.subr.bf16.mxu0 %v664
    %921 = vmatpush1.bf16.msra.mxu0 %v663
    %922 = vmatprep.subr.bf16.mxu0 %v666
    %923 = vmatpush1.bf16.msra.mxu0 %v665
    %924 = vmatprep.subr.bf16.mxu0 %v668
    %925 = vmatpush1.bf16.msra.mxu0 %v667
    %926 = vmatprep.subr.bf16.mxu0 %v670
    %927 = vmatpush1.bf16.msra.mxu0 %v669
    %928 = vmatprep.subr.bf16.mxu0 0
    %929 = vmatpush1.bf16.msra.mxu0 0
    %930 = vmatprep.subr.bf16.mxu0 0
    %931 = vmatpush1.bf16.msra.mxu0 0
    %932 = vmatprep.subr.bf16.mxu0 0
    %933 = vmatpush1.bf16.msra.mxu0 0
    %934 = vmatprep.subr.bf16.mxu0 0
    %935 = vmatpush1.bf16.msra.mxu0 0
    %936 = vmatprep.subr.bf16.mxu0 0
    %937 = vmatpush1.bf16.msra.mxu0 0
    %938 = vmatprep.subr.bf16.mxu0 0
    %939 = vmatpush1.bf16.msra.mxu0 0
    %940 = vmatprep.subr.bf16.mxu0 0
    %941 = vmatpush1.bf16.msra.mxu0 0
    %942 = vmatprep.subr.bf16.mxu0 0
    %943 = vmatpush1.bf16.msra.mxu0 0
    %944 = vmatprep.mubr.bf16.mxu0 0
    %945 = vmatmul.mubr.bf16.gmra.mrb[0].mxu0 %v215
    %v946 = vpop.f32.mrb[0].mxu0
    %v947 = vadd.f32 %v904, %v946
    %v948 = vpop.f32.mrb[0].mxu0
    %v949 = vadd.f32 %v906, %v948
    %v950 = vpop.f32.mrb[0].mxu0
    %v951 = vadd.f32 %v908, %v950
    %v952 = vpop.f32.mrb[0].mxu0
    %v953 = vadd.f32 %v910, %v952
    %954 = vdwg.mxu0
    %v955 = vmax.f32 %v947, 0.0
    %v956 = vmax.f32 %v949, 0.0
    %v957 = vmax.f32 %v951, 0.0
    %v958 = vmax.f32 %v953, 0.0
    %v959 = vpack.c.bf16 %v957, %v955
    %v960 = vpack.c.bf16 %v958, %v956
    %v961 = vld [vmem:[#allocation4] sm:$0xf]
    %v962 = vld [vmem:[#allocation4 + $0x4] sm:$0xf]
    %v963 = vld [vmem:[#allocation4 + $0x8] sm:$0xf]
    %v964 = vld [vmem:[#allocation4 + $0xc] sm:$0xf]
    %v965 = vld [vmem:[#allocation4 + $0x10] sm:$0xf]
    %v966 = vld [vmem:[#allocation4 + $0x14] sm:$0xf]
    %v967 = vld [vmem:[#allocation4 + $0x18] sm:$0xf]
    %v968 = vld [vmem:[#allocation4 + $0x1c] sm:$0xf]
    %v969 = vld [vmem:[#allocation4 + $0x20] sm:$0xf]
    %v970 = vld [vmem:[#allocation4 + $0x24] sm:$0xf]
    %v971 = vld [vmem:[#allocation4 + $0x28] sm:$0xf]
    %v972 = vld [vmem:[#allocation4 + $0x2c] sm:$0xf]
    %v973 = vld [vmem:[#allocation4 + $0x30] sm:$0xf]
    %v974 = vld [vmem:[#allocation4 + $0x34] sm:$0xf]
    %v975 = vld [vmem:[#allocation4 + $0x38] sm:$0xf]
    %v976 = vld [vmem:[#allocation4 + $0x3c] sm:$0xf]
    %v977 = vld [vmem:[#allocation4 + $0x40] sm:$0xf]
    %v978 = vld [vmem:[#allocation4 + $0x44] sm:$0xf]
    %v979 = vld [vmem:[#allocation4 + $0x48] sm:$0xf]
    %v980 = vld [vmem:[#allocation4 + $0x4c] sm:$0xf]
    %v981 = vld [vmem:[#allocation4 + $0x50] sm:$0xf]
    %v982 = vld [vmem:[#allocation4 + $0x54] sm:$0xf]
    %v983 = vld [vmem:[#allocation4 + $0x58] sm:$0xf]
    %v984 = vld [vmem:[#allocation4 + $0x5c] sm:$0xf]
    %v985 = vld [vmem:[#allocation4 + $0x60] sm:$0xf]
    %v986 = vld [vmem:[#allocation4 + $0x64] sm:$0xf]
    %v987 = vld [vmem:[#allocation4 + $0x68] sm:$0xf]
    %v988 = vld [vmem:[#allocation4 + $0x6c] sm:$0xf]
    %v989 = vld [vmem:[#allocation4 + $0x70] sm:$0xf]
    %v990 = vld [vmem:[#allocation4 + $0x74] sm:$0xf]
    %v991 = vld [vmem:[#allocation4 + $0x78] sm:$0xf]
    %v992 = vld [vmem:[#allocation4 + $0x7c] sm:$0xf]
    %v993 = vld [vmem:[%s4] sm:$0x1]
    %v995 = vlaneseq
    %v996 = vshrl.u32 %v995, 7
    %v997 = vsub.s32 0, %v996
    %v998 = vrot.slane %v993, %v997
    %v1032 = vunpack.c.l.b16 %v961
    %v1033 = vunpack.c.l.b16 %v962
    %v1034 = vunpack.c.l.b16 %v963
    %v1035 = vunpack.c.l.b16 %v964
    %v1036 = vunpack.c.l.b16 %v965
    %v1037 = vunpack.c.l.b16 %v966
    %v1038 = vunpack.c.l.b16 %v967
    %v1039 = vunpack.c.l.b16 %v968
    %v1040 = vunpack.c.l.b16 %v969
    %v1041 = vunpack.c.l.b16 %v970
    %v1042 = vunpack.c.l.b16 %v971
    %v1043 = vunpack.c.l.b16 %v972
    %v1044 = vunpack.c.l.b16 %v973
    %v1045 = vunpack.c.l.b16 %v974
    %v1046 = vunpack.c.l.b16 %v975
    %v1047 = vunpack.c.l.b16 %v976
    %v1048 = vunpack.c.l.b16 %v977
    %v1049 = vunpack.c.l.b16 %v978
    %v1050 = vunpack.c.l.b16 %v979
    %v1051 = vunpack.c.l.b16 %v980
    %v1052 = vunpack.c.l.b16 %v981
    %v1053 = vunpack.c.l.b16 %v982
    %v1054 = vunpack.c.l.b16 %v983
    %v1055 = vunpack.c.l.b16 %v984
    %v1056 = vunpack.c.l.b16 %v985
    %v1057 = vunpack.c.l.b16 %v986
    %v1058 = vunpack.c.l.b16 %v987
    %v1059 = vunpack.c.l.b16 %v988
    %v1060 = vunpack.c.l.b16 %v989
    %v1061 = vunpack.c.l.b16 %v990
    %v1062 = vunpack.c.l.b16 %v991
    %v1063 = vunpack.c.l.b16 %v992
    %v1064 = vpack.c.b16 %v1033, %v1032
    %v1065 = vpack.c.b16 %v1035, %v1034
    %v1066 = vpack.c.b16 %v1037, %v1036
    %v1067 = vpack.c.b16 %v1039, %v1038
    %v1068 = vpack.c.b16 %v1041, %v1040
    %v1069 = vpack.c.b16 %v1043, %v1042
    %v1070 = vpack.c.b16 %v1045, %v1044
    %v1071 = vpack.c.b16 %v1047, %v1046
    %v1072 = vpack.c.b16 %v1049, %v1048
    %v1073 = vpack.c.b16 %v1051, %v1050
    %v1074 = vpack.c.b16 %v1053, %v1052
    %v1075 = vpack.c.b16 %v1055, %v1054
    %v1076 = vpack.c.b16 %v1057, %v1056
    %v1077 = vpack.c.b16 %v1059, %v1058
    %v1078 = vpack.c.b16 %v1061, %v1060
    %v1079 = vpack.c.b16 %v1063, %v1062
    %1096 = vmatprep.subr.bf16.mxu0 0
    %1097 = vmatpush1.bf16.msra.mxu0 %v1064
    %1098 = vmatprep.subr.bf16.mxu0 0
    %1099 = vmatpush1.bf16.msra.mxu0 %v1065
    %1100 = vmatprep.subr.bf16.mxu0 0
    %1101 = vmatpush1.bf16.msra.mxu0 %v1066
    %1102 = vmatprep.subr.bf16.mxu0 0
    %1103 = vmatpush1.bf16.msra.mxu0 %v1067
    %1104 = vmatprep.subr.bf16.mxu0 0
    %1105 = vmatpush1.bf16.msra.mxu0 %v1068
    %1106 = vmatprep.subr.bf16.mxu0 0
    %1107 = vmatpush1.bf16.msra.mxu0 %v1069
    %1108 = vmatprep.subr.bf16.mxu0 0
    %1109 = vmatpush1.bf16.msra.mxu0 %v1070
    %1110 = vmatprep.subr.bf16.mxu0 0
    %1111 = vmatpush1.bf16.msra.mxu0 %v1071
    %1112 = vmatprep.subr.bf16.mxu0 0
    %1113 = vmatpush1.bf16.msra.mxu0 %v1072
    %1114 = vmatprep.subr.bf16.mxu0 0
    %1115 = vmatpush1.bf16.msra.mxu0 %v1073
    %1116 = vmatprep.subr.bf16.mxu0 0
    %1117 = vmatpush1.bf16.msra.mxu0 %v1074
    %1118 = vmatprep.subr.bf16.mxu0 0
    %1119 = vmatpush1.bf16.msra.mxu0 %v1075
    %1120 = vmatprep.subr.bf16.mxu0 0
    %1121 = vmatpush1.bf16.msra.mxu0 %v1076
    %1122 = vmatprep.subr.bf16.mxu0 0
    %1123 = vmatpush1.bf16.msra.mxu0 %v1077
    %1124 = vmatprep.subr.bf16.mxu0 0
    %1125 = vmatpush1.bf16.msra.mxu0 %v1078
    %1126 = vmatprep.subr.bf16.mxu0 0
    %1127 = vmatpush1.bf16.msra.mxu0 %v1079
    %1128 = vmatprep.mubr.bf16.mxu0 %v960
    %1129 = vmatmul.mubr.bf16.gmra.mrb[0].mxu0 %v959
    %v1130 = vpop.f32.mrb[0].mxu0
    %v1131 = vadd.f32 %v998, %v1130
    %v1132 = vpop.f32.mrb[0].mxu0
    %v1133 = vpop.f32.mrb[0].mxu0
    %v1134 = vadd.f32 %v998, %v1133
    %v1135 = vpop.f32.mrb[0].mxu0
    %1136 = vdwg.mxu0
    %v1137 = vmax.f32 %v1131, 0.0
    %v1138 = vmax.f32 %v1134, 0.0
    %v1139 = vpack.c.bf16 %v1138, %v1137
    %v1140 = vld [vmem:[%s5] sm:$0xf]
    %v1141 = vld [vmem:[%s5 + $0x4] sm:$0xf]
    %v1142 = vld [vmem:[%s5 + $0x8] sm:$0xf]
    %v1143 = vld [vmem:[%s5 + $0xc] sm:$0xf]
    %v1144 = vld [vmem:[%s5 + $0x10] sm:$0xf]
    %v1145 = vld [vmem:[%s5 + $0x14] sm:$0xf]
    %v1146 = vld [vmem:[%s5 + $0x18] sm:$0xf]
    %v1147 = vld [vmem:[%s5 + $0x1c] sm:$0xf]
    %v1148 = vld [vmem:[%s5 + $0x20] sm:$0xf]
    %v1149 = vld [vmem:[%s5 + $0x24] sm:$0xf]
    %v1150 = vld [vmem:[%s5 + $0x28] sm:$0xf]
    %v1151 = vld [vmem:[%s5 + $0x2c] sm:$0xf]
    %v1152 = vld [vmem:[%s5 + $0x30] sm:$0xf]
    %v1153 = vld [vmem:[%s5 + $0x34] sm:$0xf]
    %v1154 = vld [vmem:[%s5 + $0x38] sm:$0xf]
    %v1155 = vld [vmem:[%s5 + $0x3c] sm:$0xf]
    %v1156 = vld [vmem:[%s6] sm:$0x1]
    %v1158 = vlaneseq
    %v1159 = vshrl.u32 %v1158, 7
    %v1160 = vsub.s32 0, %v1159
    %v1161 = vrot.slane %v1156, %v1160
    %v1179 = vunpack.c.l.b16 %v1140
    %v1180 = vunpack.c.l.b16 %v1141
    %v1181 = vunpack.c.l.b16 %v1142
    %v1182 = vunpack.c.l.b16 %v1143
    %v1183 = vunpack.c.l.b16 %v1144
    %v1184 = vunpack.c.l.b16 %v1145
    %v1185 = vunpack.c.l.b16 %v1146
    %v1186 = vunpack.c.l.b16 %v1147
    %v1187 = vunpack.c.l.b16 %v1148
    %v1188 = vunpack.c.l.b16 %v1149
    %v1189 = vunpack.c.l.b16 %v1150
    %v1190 = vunpack.c.l.b16 %v1151
    %v1191 = vunpack.c.l.b16 %v1152
    %v1192 = vunpack.c.l.b16 %v1153
    %v1193 = vunpack.c.l.b16 %v1154
    %v1194 = vunpack.c.l.b16 %v1155
    %v1195 = vpack.c.b16 %v1180, %v1179
    %v1196 = vpack.c.b16 %v1182, %v1181
    %v1197 = vpack.c.b16 %v1184, %v1183
    %v1198 = vpack.c.b16 %v1186, %v1185
    %v1199 = vpack.c.b16 %v1188, %v1187
    %v1200 = vpack.c.b16 %v1190, %v1189
    %v1201 = vpack.c.b16 %v1192, %v1191
    %v1202 = vpack.c.b16 %v1194, %v1193
    %1211 = vmatprep.subr.bf16.mxu0 0
    %1212 = vmatpush1.bf16.msra.mxu0 %v1195
    %1213 = vmatprep.subr.bf16.mxu0 0
    %1214 = vmatpush1.bf16.msra.mxu0 %v1196
    %1215 = vmatprep.subr.bf16.mxu0 0
    %1216 = vmatpush1.bf16.msra.mxu0 %v1197
    %1217 = vmatprep.subr.bf16.mxu0 0
    %1218 = vmatpush1.bf16.msra.mxu0 %v1198
    %1219 = vmatprep.subr.bf16.mxu0 0
    %1220 = vmatpush1.bf16.msra.mxu0 %v1199
    %1221 = vmatprep.subr.bf16.mxu0 0
    %1222 = vmatpush1.bf16.msra.mxu0 %v1200
    %1223 = vmatprep.subr.bf16.mxu0 0
    %1224 = vmatpush1.bf16.msra.mxu0 %v1201
    %1225 = vmatprep.subr.bf16.mxu0 0
    %1226 = vmatpush1.bf16.msra.mxu0 %v1202
    %1227 = vmatprep.subr.bf16.mxu0 0
    %1228 = vmatpush1.bf16.msra.mxu0 0
    %1229 = vmatprep.subr.bf16.mxu0 0
    %1230 = vmatpush1.bf16.msra.mxu0 0
    %1231 = vmatprep.subr.bf16.mxu0 0
    %1232 = vmatpush1.bf16.msra.mxu0 0
    %1233 = vmatprep.subr.bf16.mxu0 0
    %1234 = vmatpush1.bf16.msra.mxu0 0
    %1235 = vmatprep.subr.bf16.mxu0 0
    %1236 = vmatpush1.bf16.msra.mxu0 0
    %1237 = vmatprep.subr.bf16.mxu0 0
    %1238 = vmatpush1.bf16.msra.mxu0 0
    %1239 = vmatprep.subr.bf16.mxu0 0
    %1240 = vmatpush1.bf16.msra.mxu0 0
    %1241 = vmatprep.subr.bf16.mxu0 0
    %1242 = vmatpush1.bf16.msra.mxu0 0
    %1243 = vmatprep.mubr.bf16.mxu0 0
    %1244 = vmatmul.mubr.bf16.gmra.mrb[0].mxu0 %v1139
    %v1245 = vpop.f32.mrb[0].mxu0
    %v1246 = vadd.f32 %v1161, %v1245
    %v1247 = vpop.f32.mrb[0].mxu0
    %v1248 = vpop.f32.mrb[0].mxu0
    %v1249 = vadd.f32 %v1161, %v1248
    %v1250 = vpop.f32.mrb[0].mxu0
    %1251 = vdwg.mxu0
    %v1252 = vlaneseq
    %v1253 = vand.u32 %v1252, 127
    %vm1254 = vcmp.lt.s32.totalorder %v1253, 5
    %v1255 = vsel %vm1254, %v1246, -1e+30
    %v1256 = vsel %vm1254, %v1249, -1e+30
    %1257 = vmax.xlane.f32.xlu0 %v1255
    %v1258 = vpop.xlane.xlu0 %1257
    %1259 = vmax.xlane.f32.xlu0 %v1256
    %v1260 = vpop.xlane.xlu0 %1259
    %v1261 = vsub.f32 %v1255, %v1258
    %v1262 = vsub.f32 %v1256, %v1260
    %v1263 = vmul.f32 %v1261, 1.442695
    %v1264 = vpow.pop %v1263
    %v1265 = vmul.f32 %v1262, 1.442695
    %v1266 = vpow.pop %v1265
    %1267 = vadd.xlane.f32.xlu0 %v1264
    %v1268 = vpop.xlane.xlu0 %1267
    %1269 = vadd.xlane.f32.xlu0 %v1266
    %v1270 = vpop.xlane.xlu0 %1269
    %v1271 = vrcp.pop %v1268
    %v1272 = vmul.f32 %v1264, %v1271
    %v1273 = vrcp.pop %v1270
    %v1274 = vmul.f32 %v1266, %v1273
    %1275 = vst [vmem:[%s7] sm:$0xff] %v1272
    %1276 = vst [vmem:[%s7 + $0x8] sm:$0xff] %v1274
    // Predicated region
    $region38: #{actor_forward.1} parent=1 // pred_check
      _
    $region39: #{actor_forward.1} parent=1 // pred_check_branch
      %1278 = sbr.rel (0) target = $region41
    $region40: #{actor_forward.1} parent=1 // pred_region
      _
    $region41: #{actor_forward.1} parent=1 // pred_fallthru
      _
    // Predicated region
    $region42: #{actor_forward.1} parent=1 // pred_check
      _
    $region43: #{actor_forward.1} parent=1 // pred_check_branch
      %1280 = sbr.rel (0) target = $region45
    $region44: #{actor_forward.1} parent=1 // pred_region
      _
    $region45: #{actor_forward.1} parent=1 // pred_fallthru
      _
    %1281 = vsyncpa [#allocation3], 1
    %1282 = vsyncpa [#allocation5], 1

</llo_original>
